<compile_context>
chip_gen: v7x
topology: tpu7x:2x2x1
jax: 0.10.0
libtpu: 0.0.40
codegen_flags: <defaults>
</compile_context>

<pallas_src>
import jax
import jax.numpy as jnp
from jax.experimental import pallas as pl
from jax.experimental.pallas import tpu as pltpu


def _round_up(n, m):
    return ((n + m - 1) // m) * m


def mlp_kernel(x_ref,
               w1_ref, b1_ref,
               w2_ref, b2_ref,
               w3_ref, b3_ref,
               w4_ref, b4_ref,
               o_ref):
    """One batch tile of the whole MLP, computed in batch-in-lanes layout.

    x_ref : (TB, in_dim)        original dtype (f32); cast to bf16 in-kernel.
    wN_ref: (outN_pad, inN_pad) pre-transposed weights (bf16), VMEM-resident.
    bN_ref: (outN_pad, 1)       biases (f32), VMEM-resident.
    o_ref : (1, TB)             lane-dense sigmoid output (f32).
    """
    wd = w1_ref.dtype            # MXU operand dtype (bf16 by default)
    acc = jnp.float32            # MXU accumulation / elementwise dtype

    x = x_ref[...].astype(wd)    # f32 -> bf16 on the VPU, hidden under the DMA

    # Layer 1: contract the feature (last) dims of both operands -> (H1, TB).
    # q.k^T-style dot_general: batch lands in lanes, no big transpose needed.
    h = jax.lax.dot_general(
        w1_ref[...], x, (((1,), (1,)), ((), ())), preferred_element_type=acc)
    h = jnp.maximum(h + b1_ref[...], 0.0)
    # TODO(synk): dropout omitted (inference/eval mode => identity). Training
    # would need pltpu.prng_seed / pltpu.prng_random_bits masking here.

    # Layers 2..3: standard (M, K) @ (K, TB) matmuls; batch stays in lanes.
    h = jnp.dot(w2_ref[...], h.astype(wd), preferred_element_type=acc)
    h = jnp.maximum(h + b2_ref[...], 0.0)

    h = jnp.dot(w3_ref[...], h.astype(wd), preferred_element_type=acc)
    h = jnp.maximum(h + b3_ref[...], 0.0)

    # Final layer: (1, H3) @ (H3, TB) -> (1, TB) lane-dense logits.
    logits = jnp.dot(w4_ref[...], h.astype(wd), preferred_element_type=acc)
    logits = logits + b4_ref[...]

    # Numerically stable sigmoid: 0.5*(tanh(z/2)+1), runs on the EUP slot.
    o_ref[...] = (0.5 * (jnp.tanh(0.5 * logits) + 1.0)).astype(o_ref.dtype)


def prepare_params(params, *, use_bf16=True):
    """One-time parameter prep (call OUTSIDE the per-step jitted forward).

    Transposes each (in, out) weight to (out, in), zero-pads hidden dims up to a
    multiple of 8 (sublane-friendly; padded units compute relu(0)=0 and their
    outgoing weights are 0, so the result is unchanged), casts weights to bf16.
    The input dim and the final output dim (1) are NOT padded.
    """
    wd = jnp.bfloat16 if use_bf16 else jnp.float32
    n = len(params)
    dims = [params[0][0].shape[0]] + [w.shape[1] for w, _ in params]
    pad = [dims[0]] + [_round_up(dims[i], 8) for i in range(1, n)] + [dims[n]]

    prepped = []
    for li, (w, b) in enumerate(params):
        in_d, out_d = w.shape
        in_p, out_p = pad[li], pad[li + 1]
        wt = jnp.zeros((out_p, in_p), jnp.float32).at[:out_d, :in_d].set(w.T)
        bt = jnp.zeros((out_p, 1), jnp.float32).at[:out_d, 0].set(b.reshape(-1))
        prepped.append((wt.astype(wd), bt))
    return prepped


def _choose_tb(batch, tb):
    if batch < 256:
        return batch                       # single full block (no 128-div needed)
    if batch <= tb:
        # Split into >=2 lane-aligned tiles so both v7x TensorCores get work
        # even when the whole batch would fit in a single tile.
        return _round_up(-(-batch // 2), 128)
    return tb


def mlp_forward(x, prepped, *, tb=2048):
    """x: (B, input_size) f32.  prepped: output of prepare_params (4 layers)."""
    B, in_dim = x.shape
    tb = _choose_tb(B, tb)
    grid = (pl.cdiv(B, tb),)               # ragged last block is masked by Pallas

    resident = lambda i: (0, 0)            # constant index_map => stays in VMEM
    in_specs = [pl.BlockSpec((tb, in_dim), lambda i: (i, 0))]
    flat = []
    for wt, bt in prepped:
        in_specs.append(pl.BlockSpec(wt.shape, resident))
        in_specs.append(pl.BlockSpec(bt.shape, resident))
        flat.extend((wt, bt))

    out = pl.pallas_call(
        mlp_kernel,
        out_shape=jax.ShapeDtypeStruct((1, B), jnp.float32),
        grid=grid,
        in_specs=in_specs,
        out_specs=pl.BlockSpec((1, tb), lambda i: (0, i)),
        compiler_params=pltpu.CompilerParams(
            dimension_semantics=("parallel",),       # 2x TC on v7x, no-op elsewhere
            vmem_limit_bytes=32 * 1024 * 1024),      # explicit, v7x-safe budget
    )(x, *flat)

    # (1, B) -> (B, 1): same row-major order, essentially free.
    return out.reshape(B, 1)


def init_linear(key, in_dim, out_dim):
    # PyTorch nn.Linear default init: U(-1/sqrt(in_dim), 1/sqrt(in_dim))
    kw, kb = jax.random.split(key)
    bound = 1.0 / jnp.sqrt(jnp.float32(in_dim))
    w = jax.random.uniform(kw, (in_dim, out_dim), jnp.float32, -bound, bound)
    b = jax.random.uniform(kb, (1, out_dim), jnp.float32, -bound, bound)
    return w, b


def ref_mlp(x, params, use_bf16=True):
    """Plain-JAX reference mimicking the kernel's bf16-in / f32-accumulate math."""
    wd = jnp.bfloat16 if use_bf16 else jnp.float32
    h = x.astype(wd)
    for i, (w, b) in enumerate(params):
        h = jnp.dot(h, w.astype(wd), preferred_element_type=jnp.float32) + b
        if i < len(params) - 1:
            h = jnp.maximum(h, 0.0).astype(wd)
    return jax.nn.sigmoid(h)


if __name__ == "__main__":
    key = jax.random.PRNGKey(0)

    batch = 8
    input_size = 32
    hidden_dims = [16, 8, 4]

    k_x, k1, k2, k3, k4 = jax.random.split(key, 5)
    x = jax.random.normal(k_x, (batch, input_size), jnp.float32)

    dims = [input_size] + hidden_dims + [1]
    params = [init_linear(k, dims[i], dims[i + 1])
              for i, k in enumerate([k1, k2, k3, k4])]

    prepped = prepare_params(params, use_bf16=True)   # one-time, outside jit

    out = jax.jit(mlp_forward)(x, prepped)
    out = jax.block_until_ready(out)
    assert out.shape == (batch, 1)

    # Check against a reference with matching (bf16 matmul, f32 accumulate) math.
    ref_bf16 = ref_mlp(x, params, use_bf16=True)
    assert jnp.allclose(out, ref_bf16, atol=1e-3, rtol=1e-3)

    # Loose check against pure-f32 PyTorch-equivalent math (bf16 rounding slack).
    h = x
    for i, (w, b) in enumerate(params):
        h = h @ w + b
        if i < len(params) - 1:
            h = jnp.maximum(h, 0.0)
    ref_f32 = jax.nn.sigmoid(h)
    assert jnp.allclose(out, ref_f32, atol=3e-2, rtol=3e-2)

    print("KERNEL_OK")
</pallas_src>

<mosaic_0001>
module attributes {stable_mosaic.version = 11 : i64} {
  func.func @mlp_kernel(%arg0: i32, %arg1: memref<8x32xf32, #tpu.memory_space<vmem>>, %arg2: memref<16x32xbf16, #tpu.memory_space<vmem>>, %arg3: memref<16x1xf32, #tpu.memory_space<vmem>>, %arg4: memref<8x16xbf16, #tpu.memory_space<vmem>>, %arg5: memref<8x1xf32, #tpu.memory_space<vmem>>, %arg6: memref<8x8xbf16, #tpu.memory_space<vmem>>, %arg7: memref<8x1xf32, #tpu.memory_space<vmem>>, %arg8: memref<1x8xbf16, #tpu.memory_space<vmem>>, %arg9: memref<1x1xf32, #tpu.memory_space<vmem>>, %arg10: memref<1x8xf32, #tpu.memory_space<vmem>>) attributes {dimension_semantics = [#tpu.dimension_semantics<parallel>], iteration_bounds = array<i64: 1>, scalar_prefetch = 0 : i64, scratch_operands = 0 : i64, tpu.core_type = #tpu.core_type<tc>, window_params = [{transform_indices = @transform_0, window_bounds = array<i64: 8, 32>}, {pipeline_mode = #tpu.pipeline_mode<synchronous>, transform_indices = @transform_1, window_bounds = array<i64: 16, 32>}, {pipeline_mode = #tpu.pipeline_mode<synchronous>, transform_indices = @transform_2, window_bounds = array<i64: 16, 1>}, {pipeline_mode = #tpu.pipeline_mode<synchronous>, transform_indices = @transform_3, window_bounds = array<i64: 8, 16>}, {pipeline_mode = #tpu.pipeline_mode<synchronous>, transform_indices = @transform_4, window_bounds = array<i64: 8, 1>}, {pipeline_mode = #tpu.pipeline_mode<synchronous>, transform_indices = @transform_5, window_bounds = array<i64: 8, 8>}, {pipeline_mode = #tpu.pipeline_mode<synchronous>, transform_indices = @transform_6, window_bounds = array<i64: 8, 1>}, {pipeline_mode = #tpu.pipeline_mode<synchronous>, transform_indices = @transform_7, window_bounds = array<i64: 1, 8>}, {pipeline_mode = #tpu.pipeline_mode<synchronous>, transform_indices = @transform_8, window_bounds = array<i64: 1, 1>}, {transform_indices = @transform_9, window_bounds = array<i64: 1, 8>}]} {
    %c0 = arith.constant 0 : index
    %c0_0 = arith.constant 0 : index
    %0 = vector.load %arg1[%c0, %c0_0] : memref<8x32xf32, #tpu.memory_space<vmem>>, vector<8x32xf32>
    %1 = arith.truncf %0 : vector<8x32xf32> to vector<8x32xbf16>
    %c0_1 = arith.constant 0 : index
    %c0_2 = arith.constant 0 : index
    %2 = vector.load %arg2[%c0_1, %c0_2] : memref<16x32xbf16, #tpu.memory_space<vmem>>, vector<16x32xbf16>
    %cst = arith.constant dense<0.000000e+00> : vector<16x8xf32>
    %3 = tpu.matmul %2, %1, %cst {dimension_numbers = #tpu.dot_dimension_numbers<[1], [1], [0], [0], [0, 0, 1, 0], [], []>} : vector<16x32xbf16>, vector<8x32xbf16>, vector<16x8xf32> -> vector<16x8xf32>
    %c0_3 = arith.constant 0 : index
    %c0_4 = arith.constant 0 : index
    %4 = vector.load %arg3[%c0_3, %c0_4] : memref<16x1xf32, #tpu.memory_space<vmem>>, vector<16x1xf32>
    %5 = vector.broadcast %4 : vector<16x1xf32> to vector<16x8xf32>
    %6 = arith.addf %3, %5 : vector<16x8xf32>
    %cst_5 = arith.constant 0.000000e+00 : f32
    %7 = vector.broadcast %cst_5 : f32 to vector<16x8xf32>
    %8 = arith.maximumf %6, %7 : vector<16x8xf32>
    %c0_6 = arith.constant 0 : index
    %c0_7 = arith.constant 0 : index
    %9 = vector.load %arg4[%c0_6, %c0_7] : memref<8x16xbf16, #tpu.memory_space<vmem>>, vector<8x16xbf16>
    %10 = arith.truncf %8 : vector<16x8xf32> to vector<16x8xbf16>
    %cst_8 = arith.constant dense<0.000000e+00> : vector<8x8xf32>
    %11 = tpu.matmul %9, %10, %cst_8 {dimension_numbers = #tpu.dot_dimension_numbers<[1], [0], [0], [1], [0, 0, 1, 1], [], []>} : vector<8x16xbf16>, vector<16x8xbf16>, vector<8x8xf32> -> vector<8x8xf32>
    %c0_9 = arith.constant 0 : index
    %c0_10 = arith.constant 0 : index
    %12 = vector.load %arg5[%c0_9, %c0_10] : memref<8x1xf32, #tpu.memory_space<vmem>>, vector<8x1xf32>
    %13 = vector.broadcast %12 : vector<8x1xf32> to vector<8x8xf32>
    %14 = arith.addf %11, %13 : vector<8x8xf32>
    %cst_11 = arith.constant 0.000000e+00 : f32
    %15 = vector.broadcast %cst_11 : f32 to vector<8x8xf32>
    %16 = arith.maximumf %14, %15 : vector<8x8xf32>
    %c0_12 = arith.constant 0 : index
    %c0_13 = arith.constant 0 : index
    %17 = vector.load %arg6[%c0_12, %c0_13] : memref<8x8xbf16, #tpu.memory_space<vmem>>, vector<8x8xbf16>
    %18 = arith.truncf %16 : vector<8x8xf32> to vector<8x8xbf16>
    %cst_14 = arith.constant dense<0.000000e+00> : vector<8x8xf32>
    %19 = tpu.matmul %17, %18, %cst_14 {dimension_numbers = #tpu.dot_dimension_numbers<[1], [0], [0], [1], [0, 0, 1, 1], [], []>} : vector<8x8xbf16>, vector<8x8xbf16>, vector<8x8xf32> -> vector<8x8xf32>
    %c0_15 = arith.constant 0 : index
    %c0_16 = arith.constant 0 : index
    %20 = vector.load %arg7[%c0_15, %c0_16] : memref<8x1xf32, #tpu.memory_space<vmem>>, vector<8x1xf32>
    %21 = vector.broadcast %20 : vector<8x1xf32> to vector<8x8xf32>
    %22 = arith.addf %19, %21 : vector<8x8xf32>
    %cst_17 = arith.constant 0.000000e+00 : f32
    %23 = vector.broadcast %cst_17 : f32 to vector<8x8xf32>
    %24 = arith.maximumf %22, %23 : vector<8x8xf32>
    %c0_18 = arith.constant 0 : index
    %c0_19 = arith.constant 0 : index
    %25 = vector.load %arg8[%c0_18, %c0_19] : memref<1x8xbf16, #tpu.memory_space<vmem>>, vector<1x8xbf16>
    %26 = arith.truncf %24 : vector<8x8xf32> to vector<8x8xbf16>
    %cst_20 = arith.constant dense<0.000000e+00> : vector<1x8xf32>
    %27 = tpu.matmul %25, %26, %cst_20 {dimension_numbers = #tpu.dot_dimension_numbers<[1], [0], [0], [1], [0, 0, 1, 1], [], []>} : vector<1x8xbf16>, vector<8x8xbf16>, vector<1x8xf32> -> vector<1x8xf32>
    %c0_21 = arith.constant 0 : index
    %c0_22 = arith.constant 0 : index
    %28 = vector.load %arg9[%c0_21, %c0_22] : memref<1x1xf32, #tpu.memory_space<vmem>>, vector<1x1xf32>
    %29 = vector.broadcast %28 : vector<1x1xf32> to vector<1x8xf32>
    %30 = arith.addf %27, %29 : vector<1x8xf32>
    %cst_23 = arith.constant 5.000000e-01 : f32
    %31 = vector.broadcast %cst_23 : f32 to vector<1x8xf32>
    %32 = arith.mulf %31, %30 : vector<1x8xf32>
    %33 = math.tanh %32 : vector<1x8xf32>
    %cst_24 = arith.constant 1.000000e+00 : f32
    %34 = vector.broadcast %cst_24 : f32 to vector<1x8xf32>
    %35 = arith.addf %33, %34 : vector<1x8xf32>
    %cst_25 = arith.constant 5.000000e-01 : f32
    %36 = vector.broadcast %cst_25 : f32 to vector<1x8xf32>
    %37 = arith.mulf %36, %35 : vector<1x8xf32>
    %c0_26 = arith.constant 0 : index
    %c0_27 = arith.constant 0 : index
    %38 = vector.load %arg10[%c0_26, %c0_27] : memref<1x8xf32, #tpu.memory_space<vmem>>, vector<1x8xf32>
    tpu.vector_store %arg10[%c0_26, %c0_27], %37 {strides = array<i32>} : memref<1x8xf32, #tpu.memory_space<vmem>>, vector<1x8xf32>,
    return
  }
  func.func @transform_0(%arg0: i32) -> (i32, i32) {
    %c0_i32 = arith.constant 0 : i32
    %c0_i32_0 = arith.constant 0 : i32
    return %arg0, %c0_i32 : i32, i32
  }
  func.func @transform_1(%arg0: i32) -> (i32, i32) {
    %c0_i32 = arith.constant 0 : i32
    %c0_i32_0 = arith.constant 0 : i32
    %c0_i32_1 = arith.constant 0 : i32
    return %c0_i32, %c0_i32_0 : i32, i32
  }
  func.func @transform_2(%arg0: i32) -> (i32, i32) {
    %c0_i32 = arith.constant 0 : i32
    %c0_i32_0 = arith.constant 0 : i32
    %c0_i32_1 = arith.constant 0 : i32
    return %c0_i32, %c0_i32_0 : i32, i32
  }
  func.func @transform_3(%arg0: i32) -> (i32, i32) {
    %c0_i32 = arith.constant 0 : i32
    %c0_i32_0 = arith.constant 0 : i32
    %c0_i32_1 = arith.constant 0 : i32
    return %c0_i32, %c0_i32_0 : i32, i32
  }
  func.func @transform_4(%arg0: i32) -> (i32, i32) {
    %c0_i32 = arith.constant 0 : i32
    %c0_i32_0 = arith.constant 0 : i32
    %c0_i32_1 = arith.constant 0 : i32
    return %c0_i32, %c0_i32_0 : i32, i32
  }
  func.func @transform_5(%arg0: i32) -> (i32, i32) {
    %c0_i32 = arith.constant 0 : i32
    %c0_i32_0 = arith.constant 0 : i32
    %c0_i32_1 = arith.constant 0 : i32
    return %c0_i32, %c0_i32_0 : i32, i32
  }
  func.func @transform_6(%arg0: i32) -> (i32, i32) {
    %c0_i32 = arith.constant 0 : i32
    %c0_i32_0 = arith.constant 0 : i32
    %c0_i32_1 = arith.constant 0 : i32
    return %c0_i32, %c0_i32_0 : i32, i32
  }
  func.func @transform_7(%arg0: i32) -> (i32, i32) {
    %c0_i32 = arith.constant 0 : i32
    %c0_i32_0 = arith.constant 0 : i32
    %c0_i32_1 = arith.constant 0 : i32
    return %c0_i32, %c0_i32_0 : i32, i32
  }
  func.func @transform_8(%arg0: i32) -> (i32, i32) {
    %c0_i32 = arith.constant 0 : i32
    %c0_i32_0 = arith.constant 0 : i32
    %c0_i32_1 = arith.constant 0 : i32
    return %c0_i32, %c0_i32_0 : i32, i32
  }
  func.func @transform_9(%arg0: i32) -> (i32, i32) {
    %c0_i32 = arith.constant 0 : i32
    %c0_i32_0 = arith.constant 0 : i32
    return %c0_i32, %arg0 : i32, i32
  }
}

</mosaic_0001>

<llo_original>
// kernel: mlp_forward.1
$region0: #{mlp_forward.1}
  #allocation0 [shape = 'u32[]', space=smem, size = 0x4, offset = 0x4, fixed_abs, tag = 'smem constant byte address 0x4 - core index']
  #allocation1 [shape = 'u32[144,128]{1,0:T(1,128)}', space=vmem, size = 0x12000, scoped, tag = 'internal scratch']
  #allocation2 [shape = 'f32[1,1]{1,0:T(1,128)S(1)}', space=vmem, size = 0x200, scoped, tag = 'scoped memory for mlp_forward.1']
  %s0 = inlined_call_operand.vmem [shape: f32[8,32], index: 0, kind: input, shape index: {}]
  %s1 = inlined_call_operand.vmem [shape: bf16[16,32], index: 1, kind: input, shape index: {}]
  %s2 = inlined_call_operand.vmem [shape: f32[16,1], index: 2, kind: input, shape index: {}]
  %s3 = inlined_call_operand.vmem [shape: bf16[8,16], index: 3, kind: input, shape index: {}]
  %s4 = inlined_call_operand.vmem [shape: f32[8,1], index: 4, kind: input, shape index: {}]
  %s5 = inlined_call_operand.vmem [shape: bf16[8,8], index: 5, kind: input, shape index: {}]
  %s6 = inlined_call_operand.vmem [shape: f32[8,1], index: 6, kind: input, shape index: {}]
  %s7 = inlined_call_operand.vmem [shape: bf16[1,8], index: 7, kind: input, shape index: {}]
  %s8 = inlined_call_operand.<no memory space> [shape: f32[1,1], index: 8, kind: input, shape index: {}]
  %s9 = inlined_call_operand.hbm [shape: f32[1,8], index: 9, kind: output, shape index: {}]
  %s10 = sld [smem:[#allocation0]]
  $region46: #{mlp_forward.1} parent=0
    _
  %s12 = ssub.s32 1, %s10
  %s13 = scalar_select 0, %s12, %s10
  %v14 = vstv %s8
  %15 = vst [vmem:[#allocation2] sm:$0x1] %v14
  $region1: #{mlp_forward.1} parent=0
    #allocation3 [shape = 'u8[512]{0}', space=vmem, size = 0x400, scoped, tag = 'output window, operand 0, single buffered']
    #allocation4 [shape = 's32[1]{0}', space=sflag, size = 0x4, scoped, tag = 'scoped memory for mlp_forward.1']
    %16 = vsyncpa [#allocation4], 0
    // Predicated region
    $region2: #{mlp_forward.1} parent=1 // pred_check
      _
    $region3: #{mlp_forward.1} parent=1 // pred_check_branch
      %18 = sbr.rel (0) target = $region5
    $region4: #{mlp_forward.1} parent=1 // pred_region
      _
    $region5: #{mlp_forward.1} parent=1 // pred_fallthru
      _
    // Predicated region
    $region6: #{mlp_forward.1} parent=1 // pred_check
      _
    $region7: #{mlp_forward.1} parent=1 // pred_check_branch
      %20 = sbr.rel (0) target = $region9
    $region8: #{mlp_forward.1} parent=1 // pred_region
      _
    $region9: #{mlp_forward.1} parent=1 // pred_fallthru
      _
    // Predicated region
    $region10: #{mlp_forward.1} parent=1 // pred_check
      _
    $region11: #{mlp_forward.1} parent=1 // pred_check_branch
      %22 = sbr.rel (0) target = $region13
    $region12: #{mlp_forward.1} parent=1 // pred_region
      _
    $region13: #{mlp_forward.1} parent=1 // pred_fallthru
      _
    // Predicated region
    $region14: #{mlp_forward.1} parent=1 // pred_check
      _
    $region15: #{mlp_forward.1} parent=1 // pred_check_branch
      %24 = sbr.rel (0) target = $region17
    $region16: #{mlp_forward.1} parent=1 // pred_region
      _
    $region17: #{mlp_forward.1} parent=1 // pred_fallthru
      _
    // Predicated region
    $region18: #{mlp_forward.1} parent=1 // pred_check
      _
    $region19: #{mlp_forward.1} parent=1 // pred_check_branch
      %26 = sbr.rel (0) target = $region21
    $region20: #{mlp_forward.1} parent=1 // pred_region
      _
    $region21: #{mlp_forward.1} parent=1 // pred_fallthru
      _
    // Predicated region
    $region22: #{mlp_forward.1} parent=1 // pred_check
      _
    $region23: #{mlp_forward.1} parent=1 // pred_check_branch
      %28 = sbr.rel (0) target = $region25
    $region24: #{mlp_forward.1} parent=1 // pred_region
      _
    $region25: #{mlp_forward.1} parent=1 // pred_fallthru
      _
    // Predicated region
    $region26: #{mlp_forward.1} parent=1 // pred_check
      _
    $region27: #{mlp_forward.1} parent=1 // pred_check_branch
      %30 = sbr.rel (0) target = $region29
    $region28: #{mlp_forward.1} parent=1 // pred_region
      _
    $region29: #{mlp_forward.1} parent=1 // pred_fallthru
      _
    // Predicated region
    $region30: #{mlp_forward.1} parent=1 // pred_check
      _
    $region31: #{mlp_forward.1} parent=1 // pred_check_branch
      %32 = sbr.rel (0) target = $region33
    $region32: #{mlp_forward.1} parent=1 // pred_region
      _
    $region33: #{mlp_forward.1} parent=1 // pred_fallthru
      _
    // Predicated region
    $region34: #{mlp_forward.1} parent=1 // pred_check
      _
    $region35: #{mlp_forward.1} parent=1 // pred_check_branch
      %34 = sbr.rel (0) target = $region37
    $region36: #{mlp_forward.1} parent=1 // pred_region
      _
    $region37: #{mlp_forward.1} parent=1 // pred_fallthru
      _
    %v36 = vld [vmem:[%s0] sm:$0xff]
    %v37 = vpack.c.bf16 %v36, %v36
    %v38 = vld [vmem:[%s1] sm:$0xf]
    %v39 = vld [vmem:[%s1 + $0x4] sm:$0xf]
    %v40 = vld [vmem:[%s2] sm:$0xff]
    %v41 = vld [vmem:[%s2 + $0x8] sm:$0xff]
    %43 = vset.pattern.permute.xlu0 0
    %44 = vperm.xlu0 %43, %v40
    %v45 = vpop.permute.xlu0 %44
    %48 = vset.pattern.permute.xlu0 0
    %49 = vperm.xlu0 %48, %v41
    %v50 = vpop.permute.xlu0 %49
    %v54 = vunpack.c.l.b16 %v38
    %v55 = vunpack.c.l.b16 %v39
    %v56 = vpack.c.b16 %v55, %v54
    %vm57 = vcmask 261120
    %v59 = vsel %vm57, %v56, 0
    %v62 = vsel %vm57, %v37, 0
    %64 = vmatprep.subr.bf16.mxu0 0
    %65 = vmatpush1.bf16.xpose.msra.mxu0 %v62
    %66 = vmatprep.subr.bf16.mxu0 0
    %67 = vmatpush1.bf16.xpose.msra.mxu0 0
    %68 = vmatprep.subr.bf16.mxu0 0
    %69 = vmatpush1.bf16.xpose.msra.mxu0 0
    %70 = vmatprep.subr.bf16.mxu0 0
    %71 = vmatpush1.bf16.xpose.msra.mxu0 0
    %72 = vmatprep.subr.bf16.mxu0 0
    %73 = vmatpush1.bf16.xpose.msra.mxu0 0
    %74 = vmatprep.subr.bf16.mxu0 0
    %75 = vmatpush1.bf16.xpose.msra.mxu0 0
    %76 = vmatprep.subr.bf16.mxu0 0
    %77 = vmatpush1.bf16.xpose.msra.mxu0 0
    %78 = vmatprep.subr.bf16.mxu0 0
    %79 = vmatpush1.bf16.xpose.msra.mxu0 0
    %80 = vmatprep.subr.bf16.mxu0 0
    %81 = vmatpush1.bf16.xpose.msra.mxu0 0
    %82 = vmatprep.subr.bf16.mxu0 0
    %83 = vmatpush1.bf16.xpose.msra.mxu0 0
    %84 = vmatprep.subr.bf16.mxu0 0
    %85 = vmatpush1.bf16.xpose.msra.mxu0 0
    %86 = vmatprep.subr.bf16.mxu0 0
    %87 = vmatpush1.bf16.xpose.msra.mxu0 0
    %88 = vmatprep.subr.bf16.mxu0 0
    %89 = vmatpush1.bf16.xpose.msra.mxu0 0
    %90 = vmatprep.subr.bf16.mxu0 0
    %91 = vmatpush1.bf16.xpose.msra.mxu0 0
    %92 = vmatprep.subr.bf16.mxu0 0
    %93 = vmatpush1.bf16.xpose.msra.mxu0 0
    %94 = vmatprep.subr.bf16.mxu0 0
    %95 = vmatpush1.bf16.xpose.msra.mxu0 0
    %96 = vmatprep.mubr.bf16.mxu0 0
    %97 = vmatmul.mubr.bf16.gmra.mrb[0].mxu0 %v59
    %v98 = vpop.f32.mrb[0].mxu0
    %v99 = vadd.f32 %v45, %v98
    %v100 = vpop.f32.mrb[0].mxu0
    %v101 = vpop.f32.mrb[0].mxu0
    %v102 = vadd.f32 %v50, %v101
    %v103 = vpop.f32.mrb[0].mxu0
    %104 = vdwg.mxu0
    %v105 = vmax.f32 %v99, 0.0
    %v106 = vmax.f32 %v102, 0.0
    %v107 = vld [vmem:[%s3] sm:$0xf]
    %v108 = vpack.c.bf16 %v106, %v105
    %v109 = vld [vmem:[%s4] sm:$0xff]
    %111 = vset.pattern.permute.xlu0 0
    %112 = vperm.xlu0 %111, %v109
    %v113 = vpop.permute.xlu0 %112
    %vm115 = vcmask 130048
    %v117 = vsel %vm115, %v107, 0
    %119 = vmatprep.subr.bf16.mxu0 0
    %120 = vmatpush1.bf16.msra.mxu0 %v108
    %121 = vmatprep.subr.bf16.mxu0 0
    %122 = vmatpush1.bf16.msra.mxu0 0
    %123 = vmatprep.subr.bf16.mxu0 0
    %124 = vmatpush1.bf16.msra.mxu0 0
    %125 = vmatprep.subr.bf16.mxu0 0
    %126 = vmatpush1.bf16.msra.mxu0 0
    %127 = vmatprep.subr.bf16.mxu0 0
    %128 = vmatpush1.bf16.msra.mxu0 0
    %129 = vmatprep.subr.bf16.mxu0 0
    %130 = vmatpush1.bf16.msra.mxu0 0
    %131 = vmatprep.subr.bf16.mxu0 0
    %132 = vmatpush1.bf16.msra.mxu0 0
    %133 = vmatprep.subr.bf16.mxu0 0
    %134 = vmatpush1.bf16.msra.mxu0 0
    %135 = vmatprep.subr.bf16.mxu0 0
    %136 = vmatpush1.bf16.msra.mxu0 0
    %137 = vmatprep.subr.bf16.mxu0 0
    %138 = vmatpush1.bf16.msra.mxu0 0
    %139 = vmatprep.subr.bf16.mxu0 0
    %140 = vmatpush1.bf16.msra.mxu0 0
    %141 = vmatprep.subr.bf16.mxu0 0
    %142 = vmatpush1.bf16.msra.mxu0 0
    %143 = vmatprep.subr.bf16.mxu0 0
    %144 = vmatpush1.bf16.msra.mxu0 0
    %145 = vmatprep.subr.bf16.mxu0 0
    %146 = vmatpush1.bf16.msra.mxu0 0
    %147 = vmatprep.subr.bf16.mxu0 0
    %148 = vmatpush1.bf16.msra.mxu0 0
    %149 = vmatprep.subr.bf16.mxu0 0
    %150 = vmatpush1.bf16.msra.mxu0 0
    %151 = vmatprep.mubr.bf16.mxu0 0
    %152 = vmatmul.mubr.bf16.gmra.mrb[0].mxu0 %v117
    %v153 = vpop.f32.mrb[0].mxu0
    %v154 = vadd.f32 %v113, %v153
    %v155 = vpop.f32.mrb[0].mxu0
    %v156 = vpop.f32.mrb[0].mxu0
    %v157 = vpop.f32.mrb[0].mxu0
    %158 = vdwg.mxu0
    %v159 = vmax.f32 %v154, 0.0
    %v160 = vld [vmem:[%s5] sm:$0xf]
    %v161 = vpack.c.bf16 %v159, %v159
    %v162 = vld [vmem:[%s6] sm:$0xff]
    %164 = vset.pattern.permute.xlu0 0
    %165 = vperm.xlu0 %164, %v162
    %v166 = vpop.permute.xlu0 %165
    %vm168 = vcmask 64512
    %v170 = vsel %vm168, %v160, 0
    %vm172 = vcmask 1043456
    %v174 = vsel %vm172, %v161, 0
    %176 = vmatprep.subr.bf16.mxu0 0
    %177 = vmatpush1.bf16.msra.mxu0 %v174
    %178 = vmatprep.subr.bf16.mxu0 0
    %179 = vmatpush1.bf16.msra.mxu0 0
    %180 = vmatprep.subr.bf16.mxu0 0
    %181 = vmatpush1.bf16.msra.mxu0 0
    %182 = vmatprep.subr.bf16.mxu0 0
    %183 = vmatpush1.bf16.msra.mxu0 0
    %184 = vmatprep.subr.bf16.mxu0 0
    %185 = vmatpush1.bf16.msra.mxu0 0
    %186 = vmatprep.subr.bf16.mxu0 0
    %187 = vmatpush1.bf16.msra.mxu0 0
    %188 = vmatprep.subr.bf16.mxu0 0
    %189 = vmatpush1.bf16.msra.mxu0 0
    %190 = vmatprep.subr.bf16.mxu0 0
    %191 = vmatpush1.bf16.msra.mxu0 0
    %192 = vmatprep.subr.bf16.mxu0 0
    %193 = vmatpush1.bf16.msra.mxu0 0
    %194 = vmatprep.subr.bf16.mxu0 0
    %195 = vmatpush1.bf16.msra.mxu0 0
    %196 = vmatprep.subr.bf16.mxu0 0
    %197 = vmatpush1.bf16.msra.mxu0 0
    %198 = vmatprep.subr.bf16.mxu0 0
    %199 = vmatpush1.bf16.msra.mxu0 0
    %200 = vmatprep.subr.bf16.mxu0 0
    %201 = vmatpush1.bf16.msra.mxu0 0
    %202 = vmatprep.subr.bf16.mxu0 0
    %203 = vmatpush1.bf16.msra.mxu0 0
    %204 = vmatprep.subr.bf16.mxu0 0
    %205 = vmatpush1.bf16.msra.mxu0 0
    %206 = vmatprep.subr.bf16.mxu0 0
    %207 = vmatpush1.bf16.msra.mxu0 0
    %208 = vmatprep.mubr.bf16.mxu0 0
    %209 = vmatmul.mubr.bf16.gmra.mrb[0].mxu0 %v170
    %v210 = vpop.f32.mrb[0].mxu0
    %v211 = vadd.f32 %v166, %v210
    %v212 = vpop.f32.mrb[0].mxu0
    %v213 = vpop.f32.mrb[0].mxu0
    %v214 = vpop.f32.mrb[0].mxu0
    %215 = vdwg.mxu0
    %v216 = vmax.f32 %v211, 0.0
    %v217 = vld [vmem:[%s7] sm:$0x1]
    %v218 = vpack.c.bf16 %v216, %v216
    %v219 = vld [vmem:[#allocation2] sm:$0x1]
    %221 = vset.pattern.permute.xlu0 0
    %222 = vperm.xlu0 %221, %v219
    %v223 = vpop.permute.xlu0 %222
    %v225 = vlaneseq
    %v226 = vshrl.u32 %v225, 7
    %v227 = vsub.s32 0, %v226
    %v228 = vrot.slane %v223, %v227
    %v230 = vsel %vm168, %v217, 0
    %v233 = vsel %vm172, %v218, 0
    %235 = vmatprep.subr.bf16.mxu0 0
    %236 = vmatpush1.bf16.msra.mxu0 %v233
    %237 = vmatprep.subr.bf16.mxu0 0
    %238 = vmatpush1.bf16.msra.mxu0 0
    %239 = vmatprep.subr.bf16.mxu0 0
    %240 = vmatpush1.bf16.msra.mxu0 0
    %241 = vmatprep.subr.bf16.mxu0 0
    %242 = vmatpush1.bf16.msra.mxu0 0
    %243 = vmatprep.subr.bf16.mxu0 0
    %244 = vmatpush1.bf16.msra.mxu0 0
    %245 = vmatprep.subr.bf16.mxu0 0
    %246 = vmatpush1.bf16.msra.mxu0 0
    %247 = vmatprep.subr.bf16.mxu0 0
    %248 = vmatpush1.bf16.msra.mxu0 0
    %249 = vmatprep.subr.bf16.mxu0 0
    %250 = vmatpush1.bf16.msra.mxu0 0
    %251 = vmatprep.subr.bf16.mxu0 0
    %252 = vmatpush1.bf16.msra.mxu0 0
    %253 = vmatprep.subr.bf16.mxu0 0
    %254 = vmatpush1.bf16.msra.mxu0 0
    %255 = vmatprep.subr.bf16.mxu0 0
    %256 = vmatpush1.bf16.msra.mxu0 0
    %257 = vmatprep.subr.bf16.mxu0 0
    %258 = vmatpush1.bf16.msra.mxu0 0
    %259 = vmatprep.subr.bf16.mxu0 0
    %260 = vmatpush1.bf16.msra.mxu0 0
    %261 = vmatprep.subr.bf16.mxu0 0
    %262 = vmatpush1.bf16.msra.mxu0 0
    %263 = vmatprep.subr.bf16.mxu0 0
    %264 = vmatpush1.bf16.msra.mxu0 0
    %265 = vmatprep.subr.bf16.mxu0 0
    %266 = vmatpush1.bf16.msra.mxu0 0
    %267 = vmatprep.mubr.bf16.mxu0 0
    %268 = vmatmul.mubr.bf16.gmra.mrb[0].mxu0 %v230
    %v269 = vpop.f32.mrb[0].mxu0
    %v270 = vadd.f32 %v228, %v269
    %v271 = vpop.f32.mrb[0].mxu0
    %v272 = vpop.f32.mrb[0].mxu0
    %v273 = vpop.f32.mrb[0].mxu0
    %274 = vdwg.mxu0
    %v275 = vmul.f32 %v270, 0.5
    %v276 = vtanh.pop %v275
    %v277 = vadd.f32 %v276, 1.0
    %v278 = vmul.f32 %v277, 0.5
    %vm279 = vcmask 57344
    %280 = vst.msk [vmem:[#allocation3] sm:$0x1] %vm279, %v278
    // Predicated region
    $region38: #{mlp_forward.1} parent=1 // pred_check
      _
    $region39: #{mlp_forward.1} parent=1 // pred_check_branch
      %282 = sbr.rel (0) target = $region41
    $region40: #{mlp_forward.1} parent=1 // pred_region
      %s284 = ssub.s32 16, 16
      %285 = vsyncadd [#allocation4], %s284
      %s287 = sshll.u32 [#allocation3], 4
      %s288 = int_to_ptr.vmem [resolvable:$true] %s287
      %290 = dma.vmem_to_hbm [thread:$0]  %s288, 16, %s9, [#allocation4]
    $region41: #{mlp_forward.1} parent=1 // pred_fallthru
      _
    // Predicated region
    $region42: #{mlp_forward.1} parent=1 // pred_check
      _
    $region43: #{mlp_forward.1} parent=1 // pred_check_branch
      %292 = sbr.rel (0) target = $region45
    $region44: #{mlp_forward.1} parent=1 // pred_region
      %293 = dma.done [#allocation4], 16
    $region45: #{mlp_forward.1} parent=1 // pred_fallthru
      _
    %294 = vsyncpa [#allocation4], 1

</llo_original>
